<compile_context>
chip_gen: v7x
topology: tpu7x:2x2x1
jax: 0.10.0
libtpu: 0.0.40
codegen_flags: <defaults>
</compile_context>

<pallas_src>
import jax
import jax.numpy as jnp
from jax.experimental import pallas as pl
from jax.experimental.pallas import tpu as pltpu


def rnn_kernel(x_ref, wih_ref, bcomb_ref, whh_ref, who_ref, bho_ref, out_ref):
    """Single-invocation RNN.

    x_ref:     (S*B_pad, I)   time-major flattened input
    wih_ref:   (I, H)         W_ih^T
    bcomb_ref: (1, H)         b_ih + b_hh
    whh_ref:   (H, H)         W_hh^T
    who_ref:   (H, O_pad)     W_ho^T, lane-padded
    bho_ref:   (1, O_pad)     b_ho, lane-padded
    out_ref:   (B_pad, O_pad)
    """
    sb = x_ref.shape[0]
    b_pad = out_ref.shape[0]
    seq = sb // b_pad

    # One MXU call for all timesteps; bias broadcast exactly once.
    x_proj = (jnp.dot(x_ref[...], wih_ref[...],
                      preferred_element_type=jnp.float32)
              + bcomb_ref[...])                       # (S*B_pad, H)

    whh = whh_ref[...]                                # (H, H), resident in vregs/VMEM

    # t = 0: h_{-1} = 0, so the recurrent matmul vanishes.
    h = jnp.tanh(x_proj[0:b_pad, :])

    # Unrolled serial chain: only one MXU op + tanh per step on the critical path.
    for t in range(1, seq):
        h = jnp.tanh(x_proj[t * b_pad:(t + 1) * b_pad, :]
                     + jnp.dot(h, whh, preferred_element_type=jnp.float32))

    # Final projection: lane-dense (B_pad, 128) store, no masked vst.
    out_ref[...] = (jnp.dot(h, who_ref[...],
                            preferred_element_type=jnp.float32)
                    + bho_ref[...]).astype(out_ref.dtype)


def simple_rnn_forward(x, w_ih, b_ih, w_hh, b_hh, w_ho, b_ho):
    """x: (B, S, I) float32; weights in PyTorch (out, in) convention."""
    B, S, I = x.shape
    H = w_ih.shape[0]
    O = w_ho.shape[0]

    LANE = 128
    SUBLANE = 8
    B_pad = ((B + SUBLANE - 1) // SUBLANE) * SUBLANE      # sublane-aligned batch
    O_pad = ((O + LANE - 1) // LANE) * LANE               # lane-dense output

    # Layout glue (cheap at small sizes; single HBM pass over x).
    x_p = jnp.pad(x, ((0, B_pad - B), (0, 0), (0, 0)))    # (B_pad, S, I)
    x_tm = jnp.transpose(x_p, (1, 0, 2)).reshape(S * B_pad, I)  # time-major flat

    wih_t = jnp.transpose(w_ih)                           # (I, H)
    whh_t = jnp.transpose(w_hh)                           # (H, H)
    who_t = jnp.pad(jnp.transpose(w_ho), ((0, 0), (0, O_pad - O)))  # (H, O_pad)
    b_comb = (b_ih + b_hh).reshape(1, H)                  # combined recurrent bias
    bho_p = jnp.pad(b_ho, (0, O_pad - O)).reshape(1, O_pad)

    out = pl.pallas_call(
        rnn_kernel,
        out_shape=jax.ShapeDtypeStruct((B_pad, O_pad), jnp.float32),
        grid_spec=pltpu.PrefetchScalarGridSpec(
            num_scalar_prefetch=0,
            grid=(1,),  # single invocation; recurrence handled in-kernel
            in_specs=[
                pl.BlockSpec((S * B_pad, I), lambda i: (0, 0)),
                pl.BlockSpec((I, H), lambda i: (0, 0)),
                pl.BlockSpec((1, H), lambda i: (0, 0)),
                pl.BlockSpec((H, H), lambda i: (0, 0)),
                pl.BlockSpec((H, O_pad), lambda i: (0, 0)),
                pl.BlockSpec((1, O_pad), lambda i: (0, 0)),
            ],
            out_specs=pl.BlockSpec((B_pad, O_pad), lambda i: (0, 0)),
        ),
        compiler_params=pltpu.CompilerParams(
            dimension_semantics=("arbitrary",)),
    )(x_tm, wih_t, b_comb, whh_t, who_t, bho_p)

    return out[:B, :O]


def simple_rnn_reference(x, w_ih, b_ih, w_hh, b_hh, w_ho, b_ho):
    B, S, I = x.shape
    H = w_ih.shape[0]
    h = jnp.zeros((B, H), jnp.float32)
    for t in range(S):
        h = jnp.tanh(x[:, t, :] @ w_ih.T + b_ih + h @ w_hh.T + b_hh)
    return h @ w_ho.T + b_ho


if __name__ == "__main__":
    input_size = 28
    hidden_size = 128
    output_size = 10
    batch = 2
    seq = 8

    key = jax.random.PRNGKey(0)
    kx, k1, k2, k3, k4, k5, k6 = jax.random.split(key, 7)

    x = jax.random.normal(kx, (batch, seq, input_size), jnp.float32)

    # Deterministic synthetic parameters (PyTorch nn.Linear weight shape: (out, in)).
    w_ih = jax.random.normal(k1, (hidden_size, input_size), jnp.float32) * 0.1
    b_ih = jax.random.normal(k2, (hidden_size,), jnp.float32) * 0.1
    w_hh = jax.random.normal(k3, (hidden_size, hidden_size), jnp.float32) * 0.1
    b_hh = jax.random.normal(k4, (hidden_size,), jnp.float32) * 0.1
    w_ho = jax.random.normal(k5, (output_size, hidden_size), jnp.float32) * 0.1
    b_ho = jax.random.normal(k6, (output_size,), jnp.float32) * 0.1

    out = simple_rnn_forward(x, w_ih, b_ih, w_hh, b_hh, w_ho, b_ho)
    out = jax.block_until_ready(out)

    ref = simple_rnn_reference(x, w_ih, b_ih, w_hh, b_hh, w_ho, b_ho)
    assert out.shape == (batch, output_size)
    assert jnp.allclose(out, ref, atol=1e-4, rtol=1e-4), "mismatch vs reference"

    print("KERNEL_OK")
</pallas_src>

<mosaic_0001>
module attributes {stable_mosaic.version = 11 : i64} {
  func.func @rnn_kernel(%arg0: i32, %arg1: memref<64x28xf32, #tpu.memory_space<vmem>>, %arg2: memref<28x128xf32, #tpu.memory_space<vmem>>, %arg3: memref<1x128xf32, #tpu.memory_space<vmem>>, %arg4: memref<128x128xf32, #tpu.memory_space<vmem>>, %arg5: memref<128x128xf32, #tpu.memory_space<vmem>>, %arg6: memref<1x128xf32, #tpu.memory_space<vmem>>, %arg7: memref<8x128xf32, #tpu.memory_space<vmem>>) attributes {dimension_semantics = [#tpu.dimension_semantics<arbitrary>], iteration_bounds = array<i64: 1>, scalar_prefetch = 0 : i64, scratch_operands = 0 : i64, tpu.core_type = #tpu.core_type<tc>, window_params = [{pipeline_mode = #tpu.pipeline_mode<synchronous>, transform_indices = @transform_0, window_bounds = array<i64: 64, 28>}, {pipeline_mode = #tpu.pipeline_mode<synchronous>, transform_indices = @transform_1, window_bounds = array<i64: 28, 128>}, {pipeline_mode = #tpu.pipeline_mode<synchronous>, transform_indices = @transform_2, window_bounds = array<i64: 1, 128>}, {pipeline_mode = #tpu.pipeline_mode<synchronous>, transform_indices = @transform_3, window_bounds = array<i64: 128, 128>}, {pipeline_mode = #tpu.pipeline_mode<synchronous>, transform_indices = @transform_4, window_bounds = array<i64: 128, 128>}, {pipeline_mode = #tpu.pipeline_mode<synchronous>, transform_indices = @transform_5, window_bounds = array<i64: 1, 128>}, {pipeline_mode = #tpu.pipeline_mode<synchronous>, transform_indices = @transform_6, window_bounds = array<i64: 8, 128>}]} {
    %c0 = arith.constant 0 : index
    %c0_0 = arith.constant 0 : index
    %0 = vector.load %arg1[%c0, %c0_0] : memref<64x28xf32, #tpu.memory_space<vmem>>, vector<64x28xf32>
    %c0_1 = arith.constant 0 : index
    %c0_2 = arith.constant 0 : index
    %1 = vector.load %arg2[%c0_1, %c0_2] : memref<28x128xf32, #tpu.memory_space<vmem>>, vector<28x128xf32>
    %cst = arith.constant dense<0.000000e+00> : vector<64x128xf32>
    %2 = tpu.matmul %0, %1, %cst {dimension_numbers = #tpu.dot_dimension_numbers<[1], [0], [0], [1], [0, 0, 1, 1], [], []>} : vector<64x28xf32>, vector<28x128xf32>, vector<64x128xf32> -> vector<64x128xf32>
    %c0_3 = arith.constant 0 : index
    %c0_4 = arith.constant 0 : index
    %3 = vector.load %arg3[%c0_3, %c0_4] : memref<1x128xf32, #tpu.memory_space<vmem>>, vector<1x128xf32>
    %4 = vector.broadcast %3 : vector<1x128xf32> to vector<64x128xf32>
    %5 = arith.addf %2, %4 : vector<64x128xf32>
    %c0_5 = arith.constant 0 : index
    %c0_6 = arith.constant 0 : index
    %6 = vector.load %arg4[%c0_5, %c0_6] : memref<128x128xf32, #tpu.memory_space<vmem>>, vector<128x128xf32>
    %7 = vector.extract_strided_slice %5 {offsets = [0, 0], sizes = [8, 128], strides = [1, 1]} : vector<64x128xf32> to vector<8x128xf32>
    %8 = math.tanh %7 : vector<8x128xf32>
    %9 = vector.extract_strided_slice %5 {offsets = [8, 0], sizes = [8, 128], strides = [1, 1]} : vector<64x128xf32> to vector<8x128xf32>
    %cst_7 = arith.constant dense<0.000000e+00> : vector<8x128xf32>
    %10 = tpu.matmul %8, %6, %cst_7 {dimension_numbers = #tpu.dot_dimension_numbers<[1], [0], [0], [1], [0, 0, 1, 1], [], []>} : vector<8x128xf32>, vector<128x128xf32>, vector<8x128xf32> -> vector<8x128xf32>
    %11 = arith.addf %9, %10 : vector<8x128xf32>
    %12 = math.tanh %11 : vector<8x128xf32>
    %13 = vector.extract_strided_slice %5 {offsets = [16, 0], sizes = [8, 128], strides = [1, 1]} : vector<64x128xf32> to vector<8x128xf32>
    %cst_8 = arith.constant dense<0.000000e+00> : vector<8x128xf32>
    %14 = tpu.matmul %12, %6, %cst_8 {dimension_numbers = #tpu.dot_dimension_numbers<[1], [0], [0], [1], [0, 0, 1, 1], [], []>} : vector<8x128xf32>, vector<128x128xf32>, vector<8x128xf32> -> vector<8x128xf32>
    %15 = arith.addf %13, %14 : vector<8x128xf32>
    %16 = math.tanh %15 : vector<8x128xf32>
    %17 = vector.extract_strided_slice %5 {offsets = [24, 0], sizes = [8, 128], strides = [1, 1]} : vector<64x128xf32> to vector<8x128xf32>
    %cst_9 = arith.constant dense<0.000000e+00> : vector<8x128xf32>
    %18 = tpu.matmul %16, %6, %cst_9 {dimension_numbers = #tpu.dot_dimension_numbers<[1], [0], [0], [1], [0, 0, 1, 1], [], []>} : vector<8x128xf32>, vector<128x128xf32>, vector<8x128xf32> -> vector<8x128xf32>
    %19 = arith.addf %17, %18 : vector<8x128xf32>
    %20 = math.tanh %19 : vector<8x128xf32>
    %21 = vector.extract_strided_slice %5 {offsets = [32, 0], sizes = [8, 128], strides = [1, 1]} : vector<64x128xf32> to vector<8x128xf32>
    %cst_10 = arith.constant dense<0.000000e+00> : vector<8x128xf32>
    %22 = tpu.matmul %20, %6, %cst_10 {dimension_numbers = #tpu.dot_dimension_numbers<[1], [0], [0], [1], [0, 0, 1, 1], [], []>} : vector<8x128xf32>, vector<128x128xf32>, vector<8x128xf32> -> vector<8x128xf32>
    %23 = arith.addf %21, %22 : vector<8x128xf32>
    %24 = math.tanh %23 : vector<8x128xf32>
    %25 = vector.extract_strided_slice %5 {offsets = [40, 0], sizes = [8, 128], strides = [1, 1]} : vector<64x128xf32> to vector<8x128xf32>
    %cst_11 = arith.constant dense<0.000000e+00> : vector<8x128xf32>
    %26 = tpu.matmul %24, %6, %cst_11 {dimension_numbers = #tpu.dot_dimension_numbers<[1], [0], [0], [1], [0, 0, 1, 1], [], []>} : vector<8x128xf32>, vector<128x128xf32>, vector<8x128xf32> -> vector<8x128xf32>
    %27 = arith.addf %25, %26 : vector<8x128xf32>
    %28 = math.tanh %27 : vector<8x128xf32>
    %29 = vector.extract_strided_slice %5 {offsets = [48, 0], sizes = [8, 128], strides = [1, 1]} : vector<64x128xf32> to vector<8x128xf32>
    %cst_12 = arith.constant dense<0.000000e+00> : vector<8x128xf32>
    %30 = tpu.matmul %28, %6, %cst_12 {dimension_numbers = #tpu.dot_dimension_numbers<[1], [0], [0], [1], [0, 0, 1, 1], [], []>} : vector<8x128xf32>, vector<128x128xf32>, vector<8x128xf32> -> vector<8x128xf32>
    %31 = arith.addf %29, %30 : vector<8x128xf32>
    %32 = math.tanh %31 : vector<8x128xf32>
    %33 = vector.extract_strided_slice %5 {offsets = [56, 0], sizes = [8, 128], strides = [1, 1]} : vector<64x128xf32> to vector<8x128xf32>
    %cst_13 = arith.constant dense<0.000000e+00> : vector<8x128xf32>
    %34 = tpu.matmul %32, %6, %cst_13 {dimension_numbers = #tpu.dot_dimension_numbers<[1], [0], [0], [1], [0, 0, 1, 1], [], []>} : vector<8x128xf32>, vector<128x128xf32>, vector<8x128xf32> -> vector<8x128xf32>
    %35 = arith.addf %33, %34 : vector<8x128xf32>
    %36 = math.tanh %35 : vector<8x128xf32>
    %c0_14 = arith.constant 0 : index
    %c0_15 = arith.constant 0 : index
    %37 = vector.load %arg5[%c0_14, %c0_15] : memref<128x128xf32, #tpu.memory_space<vmem>>, vector<128x128xf32>
    %cst_16 = arith.constant dense<0.000000e+00> : vector<8x128xf32>
    %38 = tpu.matmul %36, %37, %cst_16 {dimension_numbers = #tpu.dot_dimension_numbers<[1], [0], [0], [1], [0, 0, 1, 1], [], []>} : vector<8x128xf32>, vector<128x128xf32>, vector<8x128xf32> -> vector<8x128xf32>
    %c0_17 = arith.constant 0 : index
    %c0_18 = arith.constant 0 : index
    %39 = vector.load %arg6[%c0_17, %c0_18] : memref<1x128xf32, #tpu.memory_space<vmem>>, vector<1x128xf32>
    %40 = vector.broadcast %39 : vector<1x128xf32> to vector<8x128xf32>
    %41 = arith.addf %38, %40 : vector<8x128xf32>
    %c0_19 = arith.constant 0 : index
    %c0_20 = arith.constant 0 : index
    %42 = vector.load %arg7[%c0_19, %c0_20] : memref<8x128xf32, #tpu.memory_space<vmem>>, vector<8x128xf32>
    tpu.vector_store %arg7[%c0_19, %c0_20], %41 {strides = array<i32>} : memref<8x128xf32, #tpu.memory_space<vmem>>, vector<8x128xf32>,
    return
  }
  func.func @transform_0(%arg0: i32) -> (i32, i32) {
    %c0_i32 = arith.constant 0 : i32
    %c0_i32_0 = arith.constant 0 : i32
    %c0_i32_1 = arith.constant 0 : i32
    return %c0_i32, %c0_i32_0 : i32, i32
  }
  func.func @transform_1(%arg0: i32) -> (i32, i32) {
    %c0_i32 = arith.constant 0 : i32
    %c0_i32_0 = arith.constant 0 : i32
    %c0_i32_1 = arith.constant 0 : i32
    return %c0_i32, %c0_i32_0 : i32, i32
  }
  func.func @transform_2(%arg0: i32) -> (i32, i32) {
    %c0_i32 = arith.constant 0 : i32
    %c0_i32_0 = arith.constant 0 : i32
    %c0_i32_1 = arith.constant 0 : i32
    return %c0_i32, %c0_i32_0 : i32, i32
  }
  func.func @transform_3(%arg0: i32) -> (i32, i32) {
    %c0_i32 = arith.constant 0 : i32
    %c0_i32_0 = arith.constant 0 : i32
    %c0_i32_1 = arith.constant 0 : i32
    return %c0_i32, %c0_i32_0 : i32, i32
  }
  func.func @transform_4(%arg0: i32) -> (i32, i32) {
    %c0_i32 = arith.constant 0 : i32
    %c0_i32_0 = arith.constant 0 : i32
    %c0_i32_1 = arith.constant 0 : i32
    return %c0_i32, %c0_i32_0 : i32, i32
  }
  func.func @transform_5(%arg0: i32) -> (i32, i32) {
    %c0_i32 = arith.constant 0 : i32
    %c0_i32_0 = arith.constant 0 : i32
    %c0_i32_1 = arith.constant 0 : i32
    return %c0_i32, %c0_i32_0 : i32, i32
  }
  func.func @transform_6(%arg0: i32) -> (i32, i32) {
    %c0_i32 = arith.constant 0 : i32
    %c0_i32_0 = arith.constant 0 : i32
    %c0_i32_1 = arith.constant 0 : i32
    return %c0_i32, %c0_i32_0 : i32, i32
  }
}

</mosaic_0001>

<llo_original>
// kernel: tpu_custom_call.1
$region0: #{tpu_custom_call.1}
  #allocation0 [shape = 'u32[]', space=smem, size = 0x4, offset = 0x4, fixed_abs, tag = 'smem constant byte address 0x4 - core index']
  #allocation1 [shape = 'u32[144,128]{1,0:T(1,128)}', space=vmem, size = 0x12000, scoped, tag = 'internal scratch']
  %s0 = inlined_call_operand.vmem [shape: f32[64,28], index: 0, kind: input, shape index: {}]
  %s1 = inlined_call_operand.vmem [shape: f32[28,128], index: 1, kind: input, shape index: {}]
  %s2 = inlined_call_operand.vmem [shape: f32[1,128], index: 2, kind: input, shape index: {}]
  %s3 = inlined_call_operand.hbm [shape: f32[128,128], index: 3, kind: input, shape index: {}]
  %s4 = inlined_call_operand.hbm [shape: f32[128,128], index: 4, kind: input, shape index: {}]
  %s5 = inlined_call_operand.vmem [shape: f32[1,128], index: 5, kind: input, shape index: {}]
  %s6 = inlined_call_operand.hbm [shape: f32[8,128], index: 6, kind: output, shape index: {}]
  %s7 = sld [smem:[#allocation0]]
  $region42: #{tpu_custom_call.1} parent=0
    _
  %s9 = ssub.s32 1, %s7
  %s10 = scalar_select 0, %s9, %s7
  $region1: #{tpu_custom_call.1} parent=0
    #allocation2 [shape = 'u8[65536]{0}', space=vmem, size = 0x10000, scoped, tag = 'input window, operand 3, single buffered']
    #allocation3 [shape = 's32[1]{0}', space=sflag, size = 0x4, scoped, tag = 'scoped memory for tpu_custom_call.1']
    #allocation4 [shape = 's32[1]{0}', space=sflag, size = 0x4, scoped, tag = 'scoped memory for tpu_custom_call.1']
    #allocation5 [shape = 'u8[65536]{0}', space=vmem, size = 0x10000, scoped, tag = 'input window, operand 4, single buffered']
    #allocation6 [shape = 's32[1]{0}', space=sflag, size = 0x4, scoped, tag = 'scoped memory for tpu_custom_call.1']
    #allocation7 [shape = 'u8[4096]{0}', space=vmem, size = 0x1000, scoped, tag = 'output window, operand 0, single buffered']
    %11 = vsyncpa [#allocation3], 0
    %12 = vsyncpa [#allocation6], 0
    %13 = vsyncpa [#allocation4], 0
    // Predicated region
    $region2: #{tpu_custom_call.1} parent=1 // pred_check
      _
    $region3: #{tpu_custom_call.1} parent=1 // pred_check_branch
      %15 = sbr.rel (0) target = $region5
    $region4: #{tpu_custom_call.1} parent=1 // pred_region
      _
    $region5: #{tpu_custom_call.1} parent=1 // pred_fallthru
      _
    // Predicated region
    $region6: #{tpu_custom_call.1} parent=1 // pred_check
      _
    $region7: #{tpu_custom_call.1} parent=1 // pred_check_branch
      %17 = sbr.rel (0) target = $region9
    $region8: #{tpu_custom_call.1} parent=1 // pred_region
      _
    $region9: #{tpu_custom_call.1} parent=1 // pred_fallthru
      _
    // Predicated region
    $region10: #{tpu_custom_call.1} parent=1 // pred_check
      _
    $region11: #{tpu_custom_call.1} parent=1 // pred_check_branch
      %19 = sbr.rel (0) target = $region13
    $region12: #{tpu_custom_call.1} parent=1 // pred_region
      _
    $region13: #{tpu_custom_call.1} parent=1 // pred_fallthru
      _
    // Predicated region
    $region14: #{tpu_custom_call.1} parent=1 // pred_check
      _
    $region15: #{tpu_custom_call.1} parent=1 // pred_check_branch
      %21 = sbr.rel (0) target = $region17
    $region16: #{tpu_custom_call.1} parent=1 // pred_region
      %s23 = ssub.s32 2048, 2048
      %24 = vsyncadd [#allocation3], %s23
      %s25 = sshll.u32 [#allocation2], 4
      %s26 = int_to_ptr.vmem [resolvable:$true] %s25
      %31 = dma.hbm_to_vmem [thread:$0]  %s3, 2048, %s26, [#allocation3], 128, 128, 8
    $region17: #{tpu_custom_call.1} parent=1 // pred_fallthru
      _
    // Predicated region
    $region18: #{tpu_custom_call.1} parent=1 // pred_check
      _
    $region19: #{tpu_custom_call.1} parent=1 // pred_check_branch
      %33 = sbr.rel (0) target = $region21
    $region20: #{tpu_custom_call.1} parent=1 // pred_region
      %s35 = ssub.s32 2048, 2048
      %36 = vsyncadd [#allocation6], %s35
      %s37 = sshll.u32 [#allocation5], 4
      %s38 = int_to_ptr.vmem [resolvable:$true] %s37
      %43 = dma.hbm_to_vmem [thread:$0]  %s4, 2048, %s38, [#allocation6], 128, 128, 8
    $region21: #{tpu_custom_call.1} parent=1 // pred_fallthru
      _
    // Predicated region
    $region22: #{tpu_custom_call.1} parent=1 // pred_check
      _
    $region23: #{tpu_custom_call.1} parent=1 // pred_check_branch
      %45 = sbr.rel (0) target = $region25
    $region24: #{tpu_custom_call.1} parent=1 // pred_region
      _
    $region25: #{tpu_custom_call.1} parent=1 // pred_fallthru
      _
    // Predicated region
    $region26: #{tpu_custom_call.1} parent=1 // pred_check
      _
    $region27: #{tpu_custom_call.1} parent=1 // pred_check_branch
      %47 = sbr.rel (0) target = $region29
    $region28: #{tpu_custom_call.1} parent=1 // pred_region
      %48 = dma.done [#allocation3], 2048
    $region29: #{tpu_custom_call.1} parent=1 // pred_fallthru
      _
    // Predicated region
    $region30: #{tpu_custom_call.1} parent=1 // pred_check
      _
    $region31: #{tpu_custom_call.1} parent=1 // pred_check_branch
      %50 = sbr.rel (0) target = $region33
    $region32: #{tpu_custom_call.1} parent=1 // pred_region
      %51 = dma.done [#allocation6], 2048
    $region33: #{tpu_custom_call.1} parent=1 // pred_fallthru
      _
    %v52 = vld [vmem:[%s0] sm:$0xff]
    %v53 = vld [vmem:[%s0 + $0x8] sm:$0xff]
    %v54 = vld [vmem:[%s0 + $0x10] sm:$0xff]
    %v55 = vld [vmem:[%s0 + $0x18] sm:$0xff]
    %v56 = vld [vmem:[%s0 + $0x20] sm:$0xff]
    %v57 = vld [vmem:[%s0 + $0x28] sm:$0xff]
    %v58 = vld [vmem:[%s0 + $0x30] sm:$0xff]
    %v59 = vld [vmem:[%s0 + $0x38] sm:$0xff]
    %v60 = vld [vmem:[%s1] sm:$0xff]
    %v61 = vld [vmem:[%s1 + $0x8] sm:$0xff]
    %v62 = vld [vmem:[%s1 + $0x10] sm:$0xff]
    %v63 = vld [vmem:[%s1 + $0x18] sm:$0xf]
    %v64 = vld [vmem:[%s2] sm:$0x1]
    %v66 = vlaneseq
    %v67 = vshrl.u32 %v66, 7
    %v68 = vsub.s32 0, %v67
    %v69 = vrot.slane %v64, %v68
    %vm71 = vcmask 228352
    %v73 = vsel %vm71, %v52, 0
    %v76 = vsel %vm71, %v53, 0
    %v79 = vsel %vm71, %v54, 0
    %v82 = vsel %vm71, %v55, 0
    %v85 = vsel %vm71, %v56, 0
    %v88 = vsel %vm71, %v57, 0
    %v91 = vsel %vm71, %v58, 0
    %v94 = vsel %vm71, %v59, 0
    %vm96 = vcmask 1043456
    %v98 = vsel %vm96, %v63, 0
    %100 = vmatprep.subr.mxu0 0.0
    %101 = vmatpush1.msra.mxu0 %v60
    %102 = vmatprep.subr.mxu0 0.0
    %103 = vmatpush1.msra.mxu0 %v61
    %104 = vmatprep.subr.mxu0 0.0
    %105 = vmatpush1.msra.mxu0 %v62
    %106 = vmatprep.subr.mxu0 0.0
    %107 = vmatpush1.msra.mxu0 %v98
    %108 = vmatprep.subr.mxu0 0.0
    %109 = vmatpush1.msra.mxu0 0.0
    %110 = vmatprep.subr.mxu0 0.0
    %111 = vmatpush1.msra.mxu0 0.0
    %112 = vmatprep.subr.mxu0 0.0
    %113 = vmatpush1.msra.mxu0 0.0
    %114 = vmatprep.subr.mxu0 0.0
    %115 = vmatpush1.msra.mxu0 0.0
    %116 = vmatprep.subr.mxu0 0.0
    %117 = vmatpush1.msra.mxu0 0.0
    %118 = vmatprep.subr.mxu0 0.0
    %119 = vmatpush1.msra.mxu0 0.0
    %120 = vmatprep.subr.mxu0 0.0
    %121 = vmatpush1.msra.mxu0 0.0
    %122 = vmatprep.subr.mxu0 0.0
    %123 = vmatpush1.msra.mxu0 0.0
    %124 = vmatprep.subr.mxu0 0.0
    %125 = vmatpush1.msra.mxu0 0.0
    %126 = vmatprep.subr.mxu0 0.0
    %127 = vmatpush1.msra.mxu0 0.0
    %128 = vmatprep.subr.mxu0 0.0
    %129 = vmatpush1.msra.mxu0 0.0
    %130 = vmatprep.subr.mxu0 0.0
    %131 = vmatpush1.msra.mxu0 0.0
    %132 = vmatprep.subr.mxu0 0.0
    %133 = vmatpush1.msra.mxu0 0.0
    %134 = vmatprep.subr.mxu0 0.0
    %135 = vmatpush1.msra.mxu0 0.0
    %136 = vmatprep.subr.mxu0 0.0
    %137 = vmatpush1.msra.mxu0 0.0
    %138 = vmatprep.subr.mxu0 0.0
    %139 = vmatpush1.msra.mxu0 0.0
    %140 = vmatprep.subr.mxu0 0.0
    %141 = vmatpush1.msra.mxu0 0.0
    %142 = vmatprep.subr.mxu0 0.0
    %143 = vmatpush1.msra.mxu0 0.0
    %144 = vmatprep.subr.mxu0 0.0
    %145 = vmatpush1.msra.mxu0 0.0
    %146 = vmatprep.subr.mxu0 0.0
    %147 = vmatpush1.msra.mxu0 0.0
    %148 = vmatprep.subr.mxu0 0.0
    %149 = vmatpush1.msra.mxu0 0.0
    %150 = vmatprep.subr.mxu0 0.0
    %151 = vmatpush1.msra.mxu0 0.0
    %152 = vmatprep.subr.mxu0 0.0
    %153 = vmatpush1.msra.mxu0 0.0
    %154 = vmatprep.subr.mxu0 0.0
    %155 = vmatpush1.msra.mxu0 0.0
    %156 = vmatprep.subr.mxu0 0.0
    %157 = vmatpush1.msra.mxu0 0.0
    %158 = vmatprep.subr.mxu0 0.0
    %159 = vmatpush1.msra.mxu0 0.0
    %160 = vmatprep.subr.mxu0 0.0
    %161 = vmatpush1.msra.mxu0 0.0
    %162 = vmatprep.subr.mxu0 0.0
    %163 = vmatpush1.msra.mxu0 0.0
    %164 = vmatprep.mubr.f32.mxu0 0.0
    %165 = vmatmul.mubr.f32.gmra.mrb[0].mxu0 %v73
    %v166 = vpop.f32.mrb[0].mxu0
    %v167 = vadd.f32 %v69, %v166
    %v168 = vpop.f32.mrb[0].mxu0
    %169 = vmatprep.mubr.f32.mxu0 0.0
    %170 = vmatmul.mubr.f32.gmra.mrb[0].mxu0 %v76
    %v171 = vpop.f32.mrb[0].mxu0
    %v172 = vadd.f32 %v69, %v171
    %v173 = vpop.f32.mrb[0].mxu0
    %174 = vmatprep.mubr.f32.mxu0 0.0
    %175 = vmatmul.mubr.f32.gmra.mrb[0].mxu0 %v79
    %v176 = vpop.f32.mrb[0].mxu0
    %v177 = vadd.f32 %v69, %v176
    %v178 = vpop.f32.mrb[0].mxu0
    %179 = vmatprep.mubr.f32.mxu0 0.0
    %180 = vmatmul.mubr.f32.gmra.mrb[0].mxu0 %v82
    %v181 = vpop.f32.mrb[0].mxu0
    %v182 = vadd.f32 %v69, %v181
    %v183 = vpop.f32.mrb[0].mxu0
    %184 = vmatprep.mubr.f32.mxu0 0.0
    %185 = vmatmul.mubr.f32.gmra.mrb[0].mxu0 %v85
    %v186 = vpop.f32.mrb[0].mxu0
    %v187 = vadd.f32 %v69, %v186
    %v188 = vpop.f32.mrb[0].mxu0
    %189 = vmatprep.mubr.f32.mxu0 0.0
    %190 = vmatmul.mubr.f32.gmra.mrb[0].mxu0 %v88
    %v191 = vpop.f32.mrb[0].mxu0
    %v192 = vadd.f32 %v69, %v191
    %v193 = vpop.f32.mrb[0].mxu0
    %194 = vmatprep.mubr.f32.mxu0 0.0
    %195 = vmatmul.mubr.f32.gmra.mrb[0].mxu0 %v91
    %v196 = vpop.f32.mrb[0].mxu0
    %v197 = vadd.f32 %v69, %v196
    %v198 = vpop.f32.mrb[0].mxu0
    %199 = vmatprep.mubr.f32.mxu0 0.0
    %200 = vmatmul.mubr.f32.gmra.mrb[0].mxu0 %v94
    %v201 = vpop.f32.mrb[0].mxu0
    %v202 = vadd.f32 %v69, %v201
    %v203 = vpop.f32.mrb[0].mxu0
    %204 = vdwg.mxu0
    %v205 = vld [vmem:[#allocation2] sm:$0xff]
    %v206 = vld [vmem:[#allocation2 + $0x8] sm:$0xff]
    %v207 = vld [vmem:[#allocation2 + $0x10] sm:$0xff]
    %v208 = vld [vmem:[#allocation2 + $0x18] sm:$0xff]
    %v209 = vld [vmem:[#allocation2 + $0x20] sm:$0xff]
    %v210 = vld [vmem:[#allocation2 + $0x28] sm:$0xff]
    %v211 = vld [vmem:[#allocation2 + $0x30] sm:$0xff]
    %v212 = vld [vmem:[#allocation2 + $0x38] sm:$0xff]
    %v213 = vld [vmem:[#allocation2 + $0x40] sm:$0xff]
    %v214 = vld [vmem:[#allocation2 + $0x48] sm:$0xff]
    %v215 = vld [vmem:[#allocation2 + $0x50] sm:$0xff]
    %v216 = vld [vmem:[#allocation2 + $0x58] sm:$0xff]
    %v217 = vld [vmem:[#allocation2 + $0x60] sm:$0xff]
    %v218 = vld [vmem:[#allocation2 + $0x68] sm:$0xff]
    %v219 = vld [vmem:[#allocation2 + $0x70] sm:$0xff]
    %v220 = vld [vmem:[#allocation2 + $0x78] sm:$0xff]
    %v221 = vtanh.pop %v167
    %222 = vmatprep.subr.mxu0 0.0
    %223 = vmatpush1.msra.mxu0 %v205
    %224 = vmatprep.subr.mxu0 0.0
    %225 = vmatpush1.msra.mxu0 %v206
    %226 = vmatprep.subr.mxu0 0.0
    %227 = vmatpush1.msra.mxu0 %v207
    %228 = vmatprep.subr.mxu0 0.0
    %229 = vmatpush1.msra.mxu0 %v208
    %230 = vmatprep.subr.mxu0 0.0
    %231 = vmatpush1.msra.mxu0 %v209
    %232 = vmatprep.subr.mxu0 0.0
    %233 = vmatpush1.msra.mxu0 %v210
    %234 = vmatprep.subr.mxu0 0.0
    %235 = vmatpush1.msra.mxu0 %v211
    %236 = vmatprep.subr.mxu0 0.0
    %237 = vmatpush1.msra.mxu0 %v212
    %238 = vmatprep.subr.mxu0 0.0
    %239 = vmatpush1.msra.mxu0 %v213
    %240 = vmatprep.subr.mxu0 0.0
    %241 = vmatpush1.msra.mxu0 %v214
    %242 = vmatprep.subr.mxu0 0.0
    %243 = vmatpush1.msra.mxu0 %v215
    %244 = vmatprep.subr.mxu0 0.0
    %245 = vmatpush1.msra.mxu0 %v216
    %246 = vmatprep.subr.mxu0 0.0
    %247 = vmatpush1.msra.mxu0 %v217
    %248 = vmatprep.subr.mxu0 0.0
    %249 = vmatpush1.msra.mxu0 %v218
    %250 = vmatprep.subr.mxu0 0.0
    %251 = vmatpush1.msra.mxu0 %v219
    %252 = vmatprep.subr.mxu0 0.0
    %253 = vmatpush1.msra.mxu0 %v220
    %254 = vmatprep.subr.mxu0 0.0
    %255 = vmatpush1.msra.mxu0 0.0
    %256 = vmatprep.subr.mxu0 0.0
    %257 = vmatpush1.msra.mxu0 0.0
    %258 = vmatprep.subr.mxu0 0.0
    %259 = vmatpush1.msra.mxu0 0.0
    %260 = vmatprep.subr.mxu0 0.0
    %261 = vmatpush1.msra.mxu0 0.0
    %262 = vmatprep.subr.mxu0 0.0
    %263 = vmatpush1.msra.mxu0 0.0
    %264 = vmatprep.subr.mxu0 0.0
    %265 = vmatpush1.msra.mxu0 0.0
    %266 = vmatprep.subr.mxu0 0.0
    %267 = vmatpush1.msra.mxu0 0.0
    %268 = vmatprep.subr.mxu0 0.0
    %269 = vmatpush1.msra.mxu0 0.0
    %270 = vmatprep.subr.mxu0 0.0
    %271 = vmatpush1.msra.mxu0 0.0
    %272 = vmatprep.subr.mxu0 0.0
    %273 = vmatpush1.msra.mxu0 0.0
    %274 = vmatprep.subr.mxu0 0.0
    %275 = vmatpush1.msra.mxu0 0.0
    %276 = vmatprep.subr.mxu0 0.0
    %277 = vmatpush1.msra.mxu0 0.0
    %278 = vmatprep.subr.mxu0 0.0
    %279 = vmatpush1.msra.mxu0 0.0
    %280 = vmatprep.subr.mxu0 0.0
    %281 = vmatpush1.msra.mxu0 0.0
    %282 = vmatprep.subr.mxu0 0.0
    %283 = vmatpush1.msra.mxu0 0.0
    %284 = vmatprep.subr.mxu0 0.0
    %285 = vmatpush1.msra.mxu0 0.0
    %286 = vmatprep.mubr.f32.mxu0 0.0
    %287 = vmatmul.mubr.f32.gmra.mrb[0].mxu0 %v221
    %v288 = vpop.f32.mrb[0].mxu0
    %v289 = vadd.f32 0.0, %v288
    %v290 = vpop.f32.mrb[0].mxu0
    %291 = vdwg.mxu0
    %v292 = vadd.f32 %v172, %v289
    %v293 = vtanh.pop %v292
    %294 = vmatprep.subr.mxu0 0.0
    %295 = vmatpush1.msra.mxu0 %v205
    %296 = vmatprep.subr.mxu0 0.0
    %297 = vmatpush1.msra.mxu0 %v206
    %298 = vmatprep.subr.mxu0 0.0
    %299 = vmatpush1.msra.mxu0 %v207
    %300 = vmatprep.subr.mxu0 0.0
    %301 = vmatpush1.msra.mxu0 %v208
    %302 = vmatprep.subr.mxu0 0.0
    %303 = vmatpush1.msra.mxu0 %v209
    %304 = vmatprep.subr.mxu0 0.0
    %305 = vmatpush1.msra.mxu0 %v210
    %306 = vmatprep.subr.mxu0 0.0
    %307 = vmatpush1.msra.mxu0 %v211
    %308 = vmatprep.subr.mxu0 0.0
    %309 = vmatpush1.msra.mxu0 %v212
    %310 = vmatprep.subr.mxu0 0.0
    %311 = vmatpush1.msra.mxu0 %v213
    %312 = vmatprep.subr.mxu0 0.0
    %313 = vmatpush1.msra.mxu0 %v214
    %314 = vmatprep.subr.mxu0 0.0
    %315 = vmatpush1.msra.mxu0 %v215
    %316 = vmatprep.subr.mxu0 0.0
    %317 = vmatpush1.msra.mxu0 %v216
    %318 = vmatprep.subr.mxu0 0.0
    %319 = vmatpush1.msra.mxu0 %v217
    %320 = vmatprep.subr.mxu0 0.0
    %321 = vmatpush1.msra.mxu0 %v218
    %322 = vmatprep.subr.mxu0 0.0
    %323 = vmatpush1.msra.mxu0 %v219
    %324 = vmatprep.subr.mxu0 0.0
    %325 = vmatpush1.msra.mxu0 %v220
    %326 = vmatprep.subr.mxu0 0.0
    %327 = vmatpush1.msra.mxu0 0.0
    %328 = vmatprep.subr.mxu0 0.0
    %329 = vmatpush1.msra.mxu0 0.0
    %330 = vmatprep.subr.mxu0 0.0
    %331 = vmatpush1.msra.mxu0 0.0
    %332 = vmatprep.subr.mxu0 0.0
    %333 = vmatpush1.msra.mxu0 0.0
    %334 = vmatprep.subr.mxu0 0.0
    %335 = vmatpush1.msra.mxu0 0.0
    %336 = vmatprep.subr.mxu0 0.0
    %337 = vmatpush1.msra.mxu0 0.0
    %338 = vmatprep.subr.mxu0 0.0
    %339 = vmatpush1.msra.mxu0 0.0
    %340 = vmatprep.subr.mxu0 0.0
    %341 = vmatpush1.msra.mxu0 0.0
    %342 = vmatprep.subr.mxu0 0.0
    %343 = vmatpush1.msra.mxu0 0.0
    %344 = vmatprep.subr.mxu0 0.0
    %345 = vmatpush1.msra.mxu0 0.0
    %346 = vmatprep.subr.mxu0 0.0
    %347 = vmatpush1.msra.mxu0 0.0
    %348 = vmatprep.subr.mxu0 0.0
    %349 = vmatpush1.msra.mxu0 0.0
    %350 = vmatprep.subr.mxu0 0.0
    %351 = vmatpush1.msra.mxu0 0.0
    %352 = vmatprep.subr.mxu0 0.0
    %353 = vmatpush1.msra.mxu0 0.0
    %354 = vmatprep.subr.mxu0 0.0
    %355 = vmatpush1.msra.mxu0 0.0
    %356 = vmatprep.subr.mxu0 0.0
    %357 = vmatpush1.msra.mxu0 0.0
    %358 = vmatprep.mubr.f32.mxu0 0.0
    %359 = vmatmul.mubr.f32.gmra.mrb[0].mxu0 %v293
    %v360 = vpop.f32.mrb[0].mxu0
    %v361 = vadd.f32 0.0, %v360
    %v362 = vpop.f32.mrb[0].mxu0
    %363 = vdwg.mxu0
    %v364 = vadd.f32 %v177, %v361
    %v365 = vtanh.pop %v364
    %366 = vmatprep.subr.mxu0 0.0
    %367 = vmatpush1.msra.mxu0 %v205
    %368 = vmatprep.subr.mxu0 0.0
    %369 = vmatpush1.msra.mxu0 %v206
    %370 = vmatprep.subr.mxu0 0.0
    %371 = vmatpush1.msra.mxu0 %v207
    %372 = vmatprep.subr.mxu0 0.0
    %373 = vmatpush1.msra.mxu0 %v208
    %374 = vmatprep.subr.mxu0 0.0
    %375 = vmatpush1.msra.mxu0 %v209
    %376 = vmatprep.subr.mxu0 0.0
    %377 = vmatpush1.msra.mxu0 %v210
    %378 = vmatprep.subr.mxu0 0.0
    %379 = vmatpush1.msra.mxu0 %v211
    %380 = vmatprep.subr.mxu0 0.0
    %381 = vmatpush1.msra.mxu0 %v212
    %382 = vmatprep.subr.mxu0 0.0
    %383 = vmatpush1.msra.mxu0 %v213
    %384 = vmatprep.subr.mxu0 0.0
    %385 = vmatpush1.msra.mxu0 %v214
    %386 = vmatprep.subr.mxu0 0.0
    %387 = vmatpush1.msra.mxu0 %v215
    %388 = vmatprep.subr.mxu0 0.0
    %389 = vmatpush1.msra.mxu0 %v216
    %390 = vmatprep.subr.mxu0 0.0
    %391 = vmatpush1.msra.mxu0 %v217
    %392 = vmatprep.subr.mxu0 0.0
    %393 = vmatpush1.msra.mxu0 %v218
    %394 = vmatprep.subr.mxu0 0.0
    %395 = vmatpush1.msra.mxu0 %v219
    %396 = vmatprep.subr.mxu0 0.0
    %397 = vmatpush1.msra.mxu0 %v220
    %398 = vmatprep.subr.mxu0 0.0
    %399 = vmatpush1.msra.mxu0 0.0
    %400 = vmatprep.subr.mxu0 0.0
    %401 = vmatpush1.msra.mxu0 0.0
    %402 = vmatprep.subr.mxu0 0.0
    %403 = vmatpush1.msra.mxu0 0.0
    %404 = vmatprep.subr.mxu0 0.0
    %405 = vmatpush1.msra.mxu0 0.0
    %406 = vmatprep.subr.mxu0 0.0
    %407 = vmatpush1.msra.mxu0 0.0
    %408 = vmatprep.subr.mxu0 0.0
    %409 = vmatpush1.msra.mxu0 0.0
    %410 = vmatprep.subr.mxu0 0.0
    %411 = vmatpush1.msra.mxu0 0.0
    %412 = vmatprep.subr.mxu0 0.0
    %413 = vmatpush1.msra.mxu0 0.0
    %414 = vmatprep.subr.mxu0 0.0
    %415 = vmatpush1.msra.mxu0 0.0
    %416 = vmatprep.subr.mxu0 0.0
    %417 = vmatpush1.msra.mxu0 0.0
    %418 = vmatprep.subr.mxu0 0.0
    %419 = vmatpush1.msra.mxu0 0.0
    %420 = vmatprep.subr.mxu0 0.0
    %421 = vmatpush1.msra.mxu0 0.0
    %422 = vmatprep.subr.mxu0 0.0
    %423 = vmatpush1.msra.mxu0 0.0
    %424 = vmatprep.subr.mxu0 0.0
    %425 = vmatpush1.msra.mxu0 0.0
    %426 = vmatprep.subr.mxu0 0.0
    %427 = vmatpush1.msra.mxu0 0.0
    %428 = vmatprep.subr.mxu0 0.0
    %429 = vmatpush1.msra.mxu0 0.0
    %430 = vmatprep.mubr.f32.mxu0 0.0
    %431 = vmatmul.mubr.f32.gmra.mrb[0].mxu0 %v365
    %v432 = vpop.f32.mrb[0].mxu0
    %v433 = vadd.f32 0.0, %v432
    %v434 = vpop.f32.mrb[0].mxu0
    %435 = vdwg.mxu0
    %v436 = vadd.f32 %v182, %v433
    %v437 = vtanh.pop %v436
    %438 = vmatprep.subr.mxu0 0.0
    %439 = vmatpush1.msra.mxu0 %v205
    %440 = vmatprep.subr.mxu0 0.0
    %441 = vmatpush1.msra.mxu0 %v206
    %442 = vmatprep.subr.mxu0 0.0
    %443 = vmatpush1.msra.mxu0 %v207
    %444 = vmatprep.subr.mxu0 0.0
    %445 = vmatpush1.msra.mxu0 %v208
    %446 = vmatprep.subr.mxu0 0.0
    %447 = vmatpush1.msra.mxu0 %v209
    %448 = vmatprep.subr.mxu0 0.0
    %449 = vmatpush1.msra.mxu0 %v210
    %450 = vmatprep.subr.mxu0 0.0
    %451 = vmatpush1.msra.mxu0 %v211
    %452 = vmatprep.subr.mxu0 0.0
    %453 = vmatpush1.msra.mxu0 %v212
    %454 = vmatprep.subr.mxu0 0.0
    %455 = vmatpush1.msra.mxu0 %v213
    %456 = vmatprep.subr.mxu0 0.0
    %457 = vmatpush1.msra.mxu0 %v214
    %458 = vmatprep.subr.mxu0 0.0
    %459 = vmatpush1.msra.mxu0 %v215
    %460 = vmatprep.subr.mxu0 0.0
    %461 = vmatpush1.msra.mxu0 %v216
    %462 = vmatprep.subr.mxu0 0.0
    %463 = vmatpush1.msra.mxu0 %v217
    %464 = vmatprep.subr.mxu0 0.0
    %465 = vmatpush1.msra.mxu0 %v218
    %466 = vmatprep.subr.mxu0 0.0
    %467 = vmatpush1.msra.mxu0 %v219
    %468 = vmatprep.subr.mxu0 0.0
    %469 = vmatpush1.msra.mxu0 %v220
    %470 = vmatprep.subr.mxu0 0.0
    %471 = vmatpush1.msra.mxu0 0.0
    %472 = vmatprep.subr.mxu0 0.0
    %473 = vmatpush1.msra.mxu0 0.0
    %474 = vmatprep.subr.mxu0 0.0
    %475 = vmatpush1.msra.mxu0 0.0
    %476 = vmatprep.subr.mxu0 0.0
    %477 = vmatpush1.msra.mxu0 0.0
    %478 = vmatprep.subr.mxu0 0.0
    %479 = vmatpush1.msra.mxu0 0.0
    %480 = vmatprep.subr.mxu0 0.0
    %481 = vmatpush1.msra.mxu0 0.0
    %482 = vmatprep.subr.mxu0 0.0
    %483 = vmatpush1.msra.mxu0 0.0
    %484 = vmatprep.subr.mxu0 0.0
    %485 = vmatpush1.msra.mxu0 0.0
    %486 = vmatprep.subr.mxu0 0.0
    %487 = vmatpush1.msra.mxu0 0.0
    %488 = vmatprep.subr.mxu0 0.0
    %489 = vmatpush1.msra.mxu0 0.0
    %490 = vmatprep.subr.mxu0 0.0
    %491 = vmatpush1.msra.mxu0 0.0
    %492 = vmatprep.subr.mxu0 0.0
    %493 = vmatpush1.msra.mxu0 0.0
    %494 = vmatprep.subr.mxu0 0.0
    %495 = vmatpush1.msra.mxu0 0.0
    %496 = vmatprep.subr.mxu0 0.0
    %497 = vmatpush1.msra.mxu0 0.0
    %498 = vmatprep.subr.mxu0 0.0
    %499 = vmatpush1.msra.mxu0 0.0
    %500 = vmatprep.subr.mxu0 0.0
    %501 = vmatpush1.msra.mxu0 0.0
    %502 = vmatprep.mubr.f32.mxu0 0.0
    %503 = vmatmul.mubr.f32.gmra.mrb[0].mxu0 %v437
    %v504 = vpop.f32.mrb[0].mxu0
    %v505 = vadd.f32 0.0, %v504
    %v506 = vpop.f32.mrb[0].mxu0
    %507 = vdwg.mxu0
    %v508 = vadd.f32 %v187, %v505
    %v509 = vtanh.pop %v508
    %510 = vmatprep.subr.mxu0 0.0
    %511 = vmatpush1.msra.mxu0 %v205
    %512 = vmatprep.subr.mxu0 0.0
    %513 = vmatpush1.msra.mxu0 %v206
    %514 = vmatprep.subr.mxu0 0.0
    %515 = vmatpush1.msra.mxu0 %v207
    %516 = vmatprep.subr.mxu0 0.0
    %517 = vmatpush1.msra.mxu0 %v208
    %518 = vmatprep.subr.mxu0 0.0
    %519 = vmatpush1.msra.mxu0 %v209
    %520 = vmatprep.subr.mxu0 0.0
    %521 = vmatpush1.msra.mxu0 %v210
    %522 = vmatprep.subr.mxu0 0.0
    %523 = vmatpush1.msra.mxu0 %v211
    %524 = vmatprep.subr.mxu0 0.0
    %525 = vmatpush1.msra.mxu0 %v212
    %526 = vmatprep.subr.mxu0 0.0
    %527 = vmatpush1.msra.mxu0 %v213
    %528 = vmatprep.subr.mxu0 0.0
    %529 = vmatpush1.msra.mxu0 %v214
    %530 = vmatprep.subr.mxu0 0.0
    %531 = vmatpush1.msra.mxu0 %v215
    %532 = vmatprep.subr.mxu0 0.0
    %533 = vmatpush1.msra.mxu0 %v216
    %534 = vmatprep.subr.mxu0 0.0
    %535 = vmatpush1.msra.mxu0 %v217
    %536 = vmatprep.subr.mxu0 0.0
    %537 = vmatpush1.msra.mxu0 %v218
    %538 = vmatprep.subr.mxu0 0.0
    %539 = vmatpush1.msra.mxu0 %v219
    %540 = vmatprep.subr.mxu0 0.0
    %541 = vmatpush1.msra.mxu0 %v220
    %542 = vmatprep.subr.mxu0 0.0
    %543 = vmatpush1.msra.mxu0 0.0
    %544 = vmatprep.subr.mxu0 0.0
    %545 = vmatpush1.msra.mxu0 0.0
    %546 = vmatprep.subr.mxu0 0.0
    %547 = vmatpush1.msra.mxu0 0.0
    %548 = vmatprep.subr.mxu0 0.0
    %549 = vmatpush1.msra.mxu0 0.0
    %550 = vmatprep.subr.mxu0 0.0
    %551 = vmatpush1.msra.mxu0 0.0
    %552 = vmatprep.subr.mxu0 0.0
    %553 = vmatpush1.msra.mxu0 0.0
    %554 = vmatprep.subr.mxu0 0.0
    %555 = vmatpush1.msra.mxu0 0.0
    %556 = vmatprep.subr.mxu0 0.0
    %557 = vmatpush1.msra.mxu0 0.0
    %558 = vmatprep.subr.mxu0 0.0
    %559 = vmatpush1.msra.mxu0 0.0
    %560 = vmatprep.subr.mxu0 0.0
    %561 = vmatpush1.msra.mxu0 0.0
    %562 = vmatprep.subr.mxu0 0.0
    %563 = vmatpush1.msra.mxu0 0.0
    %564 = vmatprep.subr.mxu0 0.0
    %565 = vmatpush1.msra.mxu0 0.0
    %566 = vmatprep.subr.mxu0 0.0
    %567 = vmatpush1.msra.mxu0 0.0
    %568 = vmatprep.subr.mxu0 0.0
    %569 = vmatpush1.msra.mxu0 0.0
    %570 = vmatprep.subr.mxu0 0.0
    %571 = vmatpush1.msra.mxu0 0.0
    %572 = vmatprep.subr.mxu0 0.0
    %573 = vmatpush1.msra.mxu0 0.0
    %574 = vmatprep.mubr.f32.mxu0 0.0
    %575 = vmatmul.mubr.f32.gmra.mrb[0].mxu0 %v509
    %v576 = vpop.f32.mrb[0].mxu0
    %v577 = vadd.f32 0.0, %v576
    %v578 = vpop.f32.mrb[0].mxu0
    %579 = vdwg.mxu0
    %v580 = vadd.f32 %v192, %v577
    %v581 = vtanh.pop %v580
    %582 = vmatprep.subr.mxu0 0.0
    %583 = vmatpush1.msra.mxu0 %v205
    %584 = vmatprep.subr.mxu0 0.0
    %585 = vmatpush1.msra.mxu0 %v206
    %586 = vmatprep.subr.mxu0 0.0
    %587 = vmatpush1.msra.mxu0 %v207
    %588 = vmatprep.subr.mxu0 0.0
    %589 = vmatpush1.msra.mxu0 %v208
    %590 = vmatprep.subr.mxu0 0.0
    %591 = vmatpush1.msra.mxu0 %v209
    %592 = vmatprep.subr.mxu0 0.0
    %593 = vmatpush1.msra.mxu0 %v210
    %594 = vmatprep.subr.mxu0 0.0
    %595 = vmatpush1.msra.mxu0 %v211
    %596 = vmatprep.subr.mxu0 0.0
    %597 = vmatpush1.msra.mxu0 %v212
    %598 = vmatprep.subr.mxu0 0.0
    %599 = vmatpush1.msra.mxu0 %v213
    %600 = vmatprep.subr.mxu0 0.0
    %601 = vmatpush1.msra.mxu0 %v214
    %602 = vmatprep.subr.mxu0 0.0
    %603 = vmatpush1.msra.mxu0 %v215
    %604 = vmatprep.subr.mxu0 0.0
    %605 = vmatpush1.msra.mxu0 %v216
    %606 = vmatprep.subr.mxu0 0.0
    %607 = vmatpush1.msra.mxu0 %v217
    %608 = vmatprep.subr.mxu0 0.0
    %609 = vmatpush1.msra.mxu0 %v218
    %610 = vmatprep.subr.mxu0 0.0
    %611 = vmatpush1.msra.mxu0 %v219
    %612 = vmatprep.subr.mxu0 0.0
    %613 = vmatpush1.msra.mxu0 %v220
    %614 = vmatprep.subr.mxu0 0.0
    %615 = vmatpush1.msra.mxu0 0.0
    %616 = vmatprep.subr.mxu0 0.0
    %617 = vmatpush1.msra.mxu0 0.0
    %618 = vmatprep.subr.mxu0 0.0
    %619 = vmatpush1.msra.mxu0 0.0
    %620 = vmatprep.subr.mxu0 0.0
    %621 = vmatpush1.msra.mxu0 0.0
    %622 = vmatprep.subr.mxu0 0.0
    %623 = vmatpush1.msra.mxu0 0.0
    %624 = vmatprep.subr.mxu0 0.0
    %625 = vmatpush1.msra.mxu0 0.0
    %626 = vmatprep.subr.mxu0 0.0
    %627 = vmatpush1.msra.mxu0 0.0
    %628 = vmatprep.subr.mxu0 0.0
    %629 = vmatpush1.msra.mxu0 0.0
    %630 = vmatprep.subr.mxu0 0.0
    %631 = vmatpush1.msra.mxu0 0.0
    %632 = vmatprep.subr.mxu0 0.0
    %633 = vmatpush1.msra.mxu0 0.0
    %634 = vmatprep.subr.mxu0 0.0
    %635 = vmatpush1.msra.mxu0 0.0
    %636 = vmatprep.subr.mxu0 0.0
    %637 = vmatpush1.msra.mxu0 0.0
    %638 = vmatprep.subr.mxu0 0.0
    %639 = vmatpush1.msra.mxu0 0.0
    %640 = vmatprep.subr.mxu0 0.0
    %641 = vmatpush1.msra.mxu0 0.0
    %642 = vmatprep.subr.mxu0 0.0
    %643 = vmatpush1.msra.mxu0 0.0
    %644 = vmatprep.subr.mxu0 0.0
    %645 = vmatpush1.msra.mxu0 0.0
    %646 = vmatprep.mubr.f32.mxu0 0.0
    %647 = vmatmul.mubr.f32.gmra.mrb[0].mxu0 %v581
    %v648 = vpop.f32.mrb[0].mxu0
    %v649 = vadd.f32 0.0, %v648
    %v650 = vpop.f32.mrb[0].mxu0
    %651 = vdwg.mxu0
    %v652 = vadd.f32 %v197, %v649
    %v653 = vtanh.pop %v652
    %654 = vmatprep.subr.mxu0 0.0
    %655 = vmatpush1.msra.mxu0 %v205
    %656 = vmatprep.subr.mxu0 0.0
    %657 = vmatpush1.msra.mxu0 %v206
    %658 = vmatprep.subr.mxu0 0.0
    %659 = vmatpush1.msra.mxu0 %v207
    %660 = vmatprep.subr.mxu0 0.0
    %661 = vmatpush1.msra.mxu0 %v208
    %662 = vmatprep.subr.mxu0 0.0
    %663 = vmatpush1.msra.mxu0 %v209
    %664 = vmatprep.subr.mxu0 0.0
    %665 = vmatpush1.msra.mxu0 %v210
    %666 = vmatprep.subr.mxu0 0.0
    %667 = vmatpush1.msra.mxu0 %v211
    %668 = vmatprep.subr.mxu0 0.0
    %669 = vmatpush1.msra.mxu0 %v212
    %670 = vmatprep.subr.mxu0 0.0
    %671 = vmatpush1.msra.mxu0 %v213
    %672 = vmatprep.subr.mxu0 0.0
    %673 = vmatpush1.msra.mxu0 %v214
    %674 = vmatprep.subr.mxu0 0.0
    %675 = vmatpush1.msra.mxu0 %v215
    %676 = vmatprep.subr.mxu0 0.0
    %677 = vmatpush1.msra.mxu0 %v216
    %678 = vmatprep.subr.mxu0 0.0
    %679 = vmatpush1.msra.mxu0 %v217
    %680 = vmatprep.subr.mxu0 0.0
    %681 = vmatpush1.msra.mxu0 %v218
    %682 = vmatprep.subr.mxu0 0.0
    %683 = vmatpush1.msra.mxu0 %v219
    %684 = vmatprep.subr.mxu0 0.0
    %685 = vmatpush1.msra.mxu0 %v220
    %686 = vmatprep.subr.mxu0 0.0
    %687 = vmatpush1.msra.mxu0 0.0
    %688 = vmatprep.subr.mxu0 0.0
    %689 = vmatpush1.msra.mxu0 0.0
    %690 = vmatprep.subr.mxu0 0.0
    %691 = vmatpush1.msra.mxu0 0.0
    %692 = vmatprep.subr.mxu0 0.0
    %693 = vmatpush1.msra.mxu0 0.0
    %694 = vmatprep.subr.mxu0 0.0
    %695 = vmatpush1.msra.mxu0 0.0
    %696 = vmatprep.subr.mxu0 0.0
    %697 = vmatpush1.msra.mxu0 0.0
    %698 = vmatprep.subr.mxu0 0.0
    %699 = vmatpush1.msra.mxu0 0.0
    %700 = vmatprep.subr.mxu0 0.0
    %701 = vmatpush1.msra.mxu0 0.0
    %702 = vmatprep.subr.mxu0 0.0
    %703 = vmatpush1.msra.mxu0 0.0
    %704 = vmatprep.subr.mxu0 0.0
    %705 = vmatpush1.msra.mxu0 0.0
    %706 = vmatprep.subr.mxu0 0.0
    %707 = vmatpush1.msra.mxu0 0.0
    %708 = vmatprep.subr.mxu0 0.0
    %709 = vmatpush1.msra.mxu0 0.0
    %710 = vmatprep.subr.mxu0 0.0
    %711 = vmatpush1.msra.mxu0 0.0
    %712 = vmatprep.subr.mxu0 0.0
    %713 = vmatpush1.msra.mxu0 0.0
    %714 = vmatprep.subr.mxu0 0.0
    %715 = vmatpush1.msra.mxu0 0.0
    %716 = vmatprep.subr.mxu0 0.0
    %717 = vmatpush1.msra.mxu0 0.0
    %718 = vmatprep.mubr.f32.mxu0 0.0
    %719 = vmatmul.mubr.f32.gmra.mrb[0].mxu0 %v653
    %v720 = vpop.f32.mrb[0].mxu0
    %v721 = vadd.f32 0.0, %v720
    %v722 = vpop.f32.mrb[0].mxu0
    %723 = vdwg.mxu0
    %v724 = vadd.f32 %v202, %v721
    %v725 = vtanh.pop %v724
    %v726 = vld [vmem:[#allocation5] sm:$0xff]
    %v727 = vld [vmem:[#allocation5 + $0x8] sm:$0xff]
    %v728 = vld [vmem:[#allocation5 + $0x10] sm:$0xff]
    %v729 = vld [vmem:[#allocation5 + $0x18] sm:$0xff]
    %v730 = vld [vmem:[#allocation5 + $0x20] sm:$0xff]
    %v731 = vld [vmem:[#allocation5 + $0x28] sm:$0xff]
    %v732 = vld [vmem:[#allocation5 + $0x30] sm:$0xff]
    %v733 = vld [vmem:[#allocation5 + $0x38] sm:$0xff]
    %v734 = vld [vmem:[#allocation5 + $0x40] sm:$0xff]
    %v735 = vld [vmem:[#allocation5 + $0x48] sm:$0xff]
    %v736 = vld [vmem:[#allocation5 + $0x50] sm:$0xff]
    %v737 = vld [vmem:[#allocation5 + $0x58] sm:$0xff]
    %v738 = vld [vmem:[#allocation5 + $0x60] sm:$0xff]
    %v739 = vld [vmem:[#allocation5 + $0x68] sm:$0xff]
    %v740 = vld [vmem:[#allocation5 + $0x70] sm:$0xff]
    %v741 = vld [vmem:[#allocation5 + $0x78] sm:$0xff]
    %v742 = vld [vmem:[%s5] sm:$0x1]
    %v744 = vlaneseq
    %v745 = vshrl.u32 %v744, 7
    %v746 = vsub.s32 0, %v745
    %v747 = vrot.slane %v742, %v746
    %749 = vmatprep.subr.mxu0 0.0
    %750 = vmatpush1.msra.mxu0 %v726
    %751 = vmatprep.subr.mxu0 0.0
    %752 = vmatpush1.msra.mxu0 %v727
    %753 = vmatprep.subr.mxu0 0.0
    %754 = vmatpush1.msra.mxu0 %v728
    %755 = vmatprep.subr.mxu0 0.0
    %756 = vmatpush1.msra.mxu0 %v729
    %757 = vmatprep.subr.mxu0 0.0
    %758 = vmatpush1.msra.mxu0 %v730
    %759 = vmatprep.subr.mxu0 0.0
    %760 = vmatpush1.msra.mxu0 %v731
    %761 = vmatprep.subr.mxu0 0.0
    %762 = vmatpush1.msra.mxu0 %v732
    %763 = vmatprep.subr.mxu0 0.0
    %764 = vmatpush1.msra.mxu0 %v733
    %765 = vmatprep.subr.mxu0 0.0
    %766 = vmatpush1.msra.mxu0 %v734
    %767 = vmatprep.subr.mxu0 0.0
    %768 = vmatpush1.msra.mxu0 %v735
    %769 = vmatprep.subr.mxu0 0.0
    %770 = vmatpush1.msra.mxu0 %v736
    %771 = vmatprep.subr.mxu0 0.0
    %772 = vmatpush1.msra.mxu0 %v737
    %773 = vmatprep.subr.mxu0 0.0
    %774 = vmatpush1.msra.mxu0 %v738
    %775 = vmatprep.subr.mxu0 0.0
    %776 = vmatpush1.msra.mxu0 %v739
    %777 = vmatprep.subr.mxu0 0.0
    %778 = vmatpush1.msra.mxu0 %v740
    %779 = vmatprep.subr.mxu0 0.0
    %780 = vmatpush1.msra.mxu0 %v741
    %781 = vmatprep.subr.mxu0 0.0
    %782 = vmatpush1.msra.mxu0 0.0
    %783 = vmatprep.subr.mxu0 0.0
    %784 = vmatpush1.msra.mxu0 0.0
    %785 = vmatprep.subr.mxu0 0.0
    %786 = vmatpush1.msra.mxu0 0.0
    %787 = vmatprep.subr.mxu0 0.0
    %788 = vmatpush1.msra.mxu0 0.0
    %789 = vmatprep.subr.mxu0 0.0
    %790 = vmatpush1.msra.mxu0 0.0
    %791 = vmatprep.subr.mxu0 0.0
    %792 = vmatpush1.msra.mxu0 0.0
    %793 = vmatprep.subr.mxu0 0.0
    %794 = vmatpush1.msra.mxu0 0.0
    %795 = vmatprep.subr.mxu0 0.0
    %796 = vmatpush1.msra.mxu0 0.0
    %797 = vmatprep.subr.mxu0 0.0
    %798 = vmatpush1.msra.mxu0 0.0
    %799 = vmatprep.subr.mxu0 0.0
    %800 = vmatpush1.msra.mxu0 0.0
    %801 = vmatprep.subr.mxu0 0.0
    %802 = vmatpush1.msra.mxu0 0.0
    %803 = vmatprep.subr.mxu0 0.0
    %804 = vmatpush1.msra.mxu0 0.0
    %805 = vmatprep.subr.mxu0 0.0
    %806 = vmatpush1.msra.mxu0 0.0
    %807 = vmatprep.subr.mxu0 0.0
    %808 = vmatpush1.msra.mxu0 0.0
    %809 = vmatprep.subr.mxu0 0.0
    %810 = vmatpush1.msra.mxu0 0.0
    %811 = vmatprep.subr.mxu0 0.0
    %812 = vmatpush1.msra.mxu0 0.0
    %813 = vmatprep.mubr.f32.mxu0 0.0
    %814 = vmatmul.mubr.f32.gmra.mrb[0].mxu0 %v725
    %v815 = vpop.f32.mrb[0].mxu0
    %v816 = vadd.f32 %v747, %v815
    %v817 = vpop.f32.mrb[0].mxu0
    %818 = vdwg.mxu0
    %819 = vst [vmem:[#allocation7] sm:$0xff] %v816
    // Predicated region
    $region34: #{tpu_custom_call.1} parent=1 // pred_check
      _
    $region35: #{tpu_custom_call.1} parent=1 // pred_check_branch
      %821 = sbr.rel (0) target = $region37
    $region36: #{tpu_custom_call.1} parent=1 // pred_region
      %s823 = ssub.s32 128, 128
      %824 = vsyncadd [#allocation4], %s823
      %s826 = sshll.u32 [#allocation7], 4
      %s827 = int_to_ptr.vmem [resolvable:$true] %s826
      %829 = dma.vmem_to_hbm [thread:$0]  %s827, 128, %s6, [#allocation4]
    $region37: #{tpu_custom_call.1} parent=1 // pred_fallthru
      _
    // Predicated region
    $region38: #{tpu_custom_call.1} parent=1 // pred_check
      _
    $region39: #{tpu_custom_call.1} parent=1 // pred_check_branch
      %831 = sbr.rel (0) target = $region41
    $region40: #{tpu_custom_call.1} parent=1 // pred_region
      %832 = dma.done [#allocation4], 128
    $region41: #{tpu_custom_call.1} parent=1 // pred_fallthru
      _
    %833 = vsyncpa [#allocation3], 1
    %834 = vsyncpa [#allocation6], 1
    %835 = vsyncpa [#allocation4], 1

</llo_original>
